<compile_context>
chip_gen: v6e
topology: v6e:2x2x1
jax: 0.10.0
libtpu: 0.0.40
codegen_flags: <defaults>
</compile_context>

<pallas_src>
import functools

import jax
import jax.numpy as jnp
from jax.experimental import pallas as pl
from jax.experimental.pallas import tpu as pltpu

INPUT_SIZE = 28 * 28   # 784
HIDDEN_SIZE = 128
OUTPUT_SIZE = 10
OUT_PAD = 128          # lane-dense output width (multiple of 128)
LN_EPS = 1e-5
DEFAULT_TILE_B = 512   # big batch tile: amortize per-step overhead, saturate HBM/MXU


def _round_up(n, m):
    return ((n + m - 1) // m) * m


def _mlp_ln_kernel(x_ref, w1_ref, b1_ref, g_ref, beta_ref, w2_ref, b2_ref, o_ref):
    # fc1: (tb, 784)bf16 @ (784, 128)bf16 on the MXU, f32 accumulation.
    h = jnp.dot(x_ref[...], w1_ref[...], preferred_element_type=jnp.float32)
    h = h + b1_ref[...]

    # LayerNorm over the hidden dim (biased variance, eps inside sqrt) — all in f32.
    mean = jnp.mean(h, axis=-1, keepdims=True)
    centered = h - mean
    var = jnp.mean(centered * centered, axis=-1, keepdims=True)
    h_norm = centered * jax.lax.rsqrt(var + LN_EPS)
    h_norm = h_norm * g_ref[...] + beta_ref[...]

    # ReLU, then cast to bf16 for the second MXU matmul.
    a = jnp.maximum(h_norm, 0.0).astype(jnp.bfloat16)

    # fc2 into a lane-dense (tb, 128) slab; columns >= OUTPUT_SIZE are zero-padded.
    out = jnp.dot(a, w2_ref[...], preferred_element_type=jnp.float32) + b2_ref[...]
    o_ref[...] = out.astype(o_ref.dtype)


@functools.partial(jax.jit, static_argnames=("tile_b",))
def model_with_layernorm(x, w1, b1, gamma, beta, w2, b2, *, tile_b=None):
    """x: (B, 784) float32 -> (B, 10) float32."""
    B, D_in = x.shape
    assert D_in == INPUT_SIZE

    if tile_b is None:
        tile_b = DEFAULT_TILE_B
    tile_b = _round_up(tile_b, 8)
    # Don't tile past the (padded) batch; cap at 1024 so double-buffered bf16 x tiles
    # (~1.5 MiB each) stay comfortably inside even v7x's 64 MiB VMEM / 32 MiB scoped default.
    tile_b = min(tile_b, _round_up(B, 8), 1024)
    B_pad = _round_up(B, tile_b)

    # Pad batch to a tile multiple; pad fc2 output dim to 128 lanes for unmasked stores.
    x_p = jnp.pad(x, ((0, B_pad - B), (0, 0)))
    w2_p = jnp.pad(w2, ((0, 0), (0, OUT_PAD - OUTPUT_SIZE)))
    b2_p = jnp.pad(b2, ((0, 0), (0, OUT_PAD - OUTPUT_SIZE)))

    # bf16 MXU operands; accumulation and LayerNorm statistics remain f32 in-kernel.
    x_bf = x_p.astype(jnp.bfloat16)
    w1_bf = w1.astype(jnp.bfloat16)
    w2_bf = w2_p.astype(jnp.bfloat16)

    grid = (B_pad // tile_b,)

    out = pl.pallas_call(
        _mlp_ln_kernel,
        out_shape=jax.ShapeDtypeStruct((B_pad, OUT_PAD), jnp.float32),
        grid_spec=pltpu.PrefetchScalarGridSpec(
            num_scalar_prefetch=0,
            grid=grid,
            in_specs=[
                pl.BlockSpec((tile_b, INPUT_SIZE), lambda i: (i, 0)),         # x tile (streams)
                pl.BlockSpec((INPUT_SIZE, HIDDEN_SIZE), lambda i: (0, 0)),    # w1 (resident)
                pl.BlockSpec((1, HIDDEN_SIZE), lambda i: (0, 0)),             # b1
                pl.BlockSpec((1, HIDDEN_SIZE), lambda i: (0, 0)),             # gamma
                pl.BlockSpec((1, HIDDEN_SIZE), lambda i: (0, 0)),             # beta
                pl.BlockSpec((HIDDEN_SIZE, OUT_PAD), lambda i: (0, 0)),       # w2 (padded, resident)
                pl.BlockSpec((1, OUT_PAD), lambda i: (0, 0)),                 # b2 (padded)
            ],
            out_specs=pl.BlockSpec((tile_b, OUT_PAD), lambda i: (i, 0)),
        ),
        compiler_params=pltpu.CompilerParams(
            dimension_semantics=("parallel",),  # lets v7x shard batch tiles across its 2 TCs
        ),
    )(x_bf, w1_bf, b1, gamma, beta, w2_bf, b2_p)

    # Strip batch padding and the lane padding on the output features.
    return out[:B, :OUTPUT_SIZE]


def init_params(key):
    """Deterministic param init matching the shapes in ModelWithLayerNorm.__init__."""
    k1, k2, k3, k4 = jax.random.split(key, 4)
    # Kaiming-uniform-ish bounds like nn.Linear default init.
    bound1 = 1.0 / jnp.sqrt(INPUT_SIZE)
    bound2 = 1.0 / jnp.sqrt(HIDDEN_SIZE)
    w1 = jax.random.uniform(k1, (INPUT_SIZE, HIDDEN_SIZE), jnp.float32, -bound1, bound1)
    b1 = jax.random.uniform(k2, (1, HIDDEN_SIZE), jnp.float32, -bound1, bound1)
    w2 = jax.random.uniform(k3, (HIDDEN_SIZE, OUTPUT_SIZE), jnp.float32, -bound2, bound2)
    b2 = jax.random.uniform(k4, (1, OUTPUT_SIZE), jnp.float32, -bound2, bound2)
    # LayerNorm: weight=1, bias=0 (PyTorch default).
    gamma = jnp.ones((1, HIDDEN_SIZE), jnp.float32)
    beta = jnp.zeros((1, HIDDEN_SIZE), jnp.float32)
    return w1, b1, gamma, beta, w2, b2


def reference(x, w1, b1, gamma, beta, w2, b2):
    h = x @ w1 + b1
    mean = jnp.mean(h, axis=-1, keepdims=True)
    var = jnp.mean((h - mean) ** 2, axis=-1, keepdims=True)
    h = (h - mean) / jnp.sqrt(var + LN_EPS) * gamma + beta
    h = jnp.maximum(h, 0.0)
    return h @ w2 + b2


if __name__ == "__main__":
    key = jax.random.PRNGKey(0)
    kx, kx2, kp = jax.random.split(key, 3)
    params = init_params(kp)

    # bf16 MXU operands vs. f32 reference -> loosened tolerance.
    ATOL = 5e-2

    # Case 1: small, tile-aligned batch.
    x = jax.random.normal(kx, (8, INPUT_SIZE), jnp.float32)
    out = jax.block_until_ready(model_with_layernorm(x, *params))
    ref = reference(x, *params)
    assert out.shape == (8, OUTPUT_SIZE), out.shape
    assert jnp.allclose(out, ref, atol=ATOL, rtol=ATOL), float(jnp.max(jnp.abs(out - ref)))

    # Case 2: batch not a multiple of the tile -> exercises the padding path.
    x2 = jax.random.normal(kx2, (37, INPUT_SIZE), jnp.float32)
    out2 = jax.block_until_ready(model_with_layernorm(x2, *params))
    ref2 = reference(x2, *params)
    assert out2.shape == (37, OUTPUT_SIZE), out2.shape
    assert jnp.allclose(out2, ref2, atol=ATOL, rtol=ATOL), float(jnp.max(jnp.abs(out2 - ref2)))

    print("KERNEL_OK")
</pallas_src>

<mosaic_0001>
module attributes {stable_mosaic.version = 11 : i64} {
  func.func @_mlp_ln_kernel(%arg0: i32, %arg1: memref<8x784xbf16, #tpu.memory_space<vmem>>, %arg2: memref<784x128xbf16, #tpu.memory_space<vmem>>, %arg3: memref<1x128xf32, #tpu.memory_space<vmem>>, %arg4: memref<1x128xf32, #tpu.memory_space<vmem>>, %arg5: memref<1x128xf32, #tpu.memory_space<vmem>>, %arg6: memref<128x128xbf16, #tpu.memory_space<vmem>>, %arg7: memref<1x128xf32, #tpu.memory_space<vmem>>, %arg8: memref<8x128xf32, #tpu.memory_space<vmem>>) attributes {dimension_semantics = [#tpu.dimension_semantics<parallel>], iteration_bounds = array<i64: 1>, scalar_prefetch = 0 : i64, scratch_operands = 0 : i64, tpu.core_type = #tpu.core_type<tc>, window_params = [{transform_indices = @transform_0, window_bounds = array<i64: 8, 784>}, {pipeline_mode = #tpu.pipeline_mode<synchronous>, transform_indices = @transform_1, window_bounds = array<i64: 784, 128>}, {pipeline_mode = #tpu.pipeline_mode<synchronous>, transform_indices = @transform_2, window_bounds = array<i64: 1, 128>}, {pipeline_mode = #tpu.pipeline_mode<synchronous>, transform_indices = @transform_3, window_bounds = array<i64: 1, 128>}, {pipeline_mode = #tpu.pipeline_mode<synchronous>, transform_indices = @transform_4, window_bounds = array<i64: 1, 128>}, {pipeline_mode = #tpu.pipeline_mode<synchronous>, transform_indices = @transform_5, window_bounds = array<i64: 128, 128>}, {pipeline_mode = #tpu.pipeline_mode<synchronous>, transform_indices = @transform_6, window_bounds = array<i64: 1, 128>}, {transform_indices = @transform_7, window_bounds = array<i64: 8, 128>}]} {
    %c0 = arith.constant 0 : index
    %c0_0 = arith.constant 0 : index
    %0 = vector.load %arg1[%c0, %c0_0] : memref<8x784xbf16, #tpu.memory_space<vmem>>, vector<8x784xbf16>
    %c0_1 = arith.constant 0 : index
    %c0_2 = arith.constant 0 : index
    %1 = vector.load %arg2[%c0_1, %c0_2] : memref<784x128xbf16, #tpu.memory_space<vmem>>, vector<784x128xbf16>
    %cst = arith.constant dense<0.000000e+00> : vector<8x128xf32>
    %2 = tpu.matmul %0, %1, %cst {dimension_numbers = #tpu.dot_dimension_numbers<[1], [0], [0], [1], [0, 0, 1, 1], [], []>} : vector<8x784xbf16>, vector<784x128xbf16>, vector<8x128xf32> -> vector<8x128xf32>
    %c0_3 = arith.constant 0 : index
    %c0_4 = arith.constant 0 : index
    %3 = vector.load %arg3[%c0_3, %c0_4] : memref<1x128xf32, #tpu.memory_space<vmem>>, vector<1x128xf32>
    %4 = vector.broadcast %3 : vector<1x128xf32> to vector<8x128xf32>
    %5 = arith.addf %2, %4 : vector<8x128xf32>
    %cst_5 = arith.constant dense<0.000000e+00> : vector<8xf32>
    %6 = vector.multi_reduction <add>, %5, %cst_5 [1] : vector<8x128xf32> to vector<8xf32>
    %7 = vector.shape_cast %6 : vector<8xf32> to vector<8x1xf32>
    %cst_6 = arith.constant 1.280000e+02 : f32
    %8 = vector.broadcast %cst_6 : f32 to vector<8x1xf32>
    %9 = arith.divf %7, %8 : vector<8x1xf32>
    %10 = vector.broadcast %9 : vector<8x1xf32> to vector<8x128xf32>
    %11 = arith.subf %5, %10 : vector<8x128xf32>
    %12 = arith.mulf %11, %11 : vector<8x128xf32>
    %cst_7 = arith.constant dense<0.000000e+00> : vector<8xf32>
    %13 = vector.multi_reduction <add>, %12, %cst_7 [1] : vector<8x128xf32> to vector<8xf32>
    %14 = vector.shape_cast %13 : vector<8xf32> to vector<8x1xf32>
    %cst_8 = arith.constant 1.280000e+02 : f32
    %15 = vector.broadcast %cst_8 : f32 to vector<8x1xf32>
    %16 = arith.divf %14, %15 : vector<8x1xf32>
    %cst_9 = arith.constant 9.99999974E-6 : f32
    %17 = vector.broadcast %cst_9 : f32 to vector<8x1xf32>
    %18 = arith.addf %16, %17 : vector<8x1xf32>
    %19 = math.rsqrt %18 : vector<8x1xf32>
    %20 = vector.broadcast %19 : vector<8x1xf32> to vector<8x128xf32>
    %21 = arith.mulf %11, %20 : vector<8x128xf32>
    %c0_10 = arith.constant 0 : index
    %c0_11 = arith.constant 0 : index
    %22 = vector.load %arg4[%c0_10, %c0_11] : memref<1x128xf32, #tpu.memory_space<vmem>>, vector<1x128xf32>
    %23 = vector.broadcast %22 : vector<1x128xf32> to vector<8x128xf32>
    %24 = arith.mulf %21, %23 : vector<8x128xf32>
    %c0_12 = arith.constant 0 : index
    %c0_13 = arith.constant 0 : index
    %25 = vector.load %arg5[%c0_12, %c0_13] : memref<1x128xf32, #tpu.memory_space<vmem>>, vector<1x128xf32>
    %26 = vector.broadcast %25 : vector<1x128xf32> to vector<8x128xf32>
    %27 = arith.addf %24, %26 : vector<8x128xf32>
    %cst_14 = arith.constant 0.000000e+00 : f32
    %28 = vector.broadcast %cst_14 : f32 to vector<8x128xf32>
    %29 = arith.maximumf %27, %28 : vector<8x128xf32>
    %30 = arith.truncf %29 : vector<8x128xf32> to vector<8x128xbf16>
    %c0_15 = arith.constant 0 : index
    %c0_16 = arith.constant 0 : index
    %31 = vector.load %arg6[%c0_15, %c0_16] : memref<128x128xbf16, #tpu.memory_space<vmem>>, vector<128x128xbf16>
    %cst_17 = arith.constant dense<0.000000e+00> : vector<8x128xf32>
    %32 = tpu.matmul %30, %31, %cst_17 {dimension_numbers = #tpu.dot_dimension_numbers<[1], [0], [0], [1], [0, 0, 1, 1], [], []>} : vector<8x128xbf16>, vector<128x128xbf16>, vector<8x128xf32> -> vector<8x128xf32>
    %c0_18 = arith.constant 0 : index
    %c0_19 = arith.constant 0 : index
    %33 = vector.load %arg7[%c0_18, %c0_19] : memref<1x128xf32, #tpu.memory_space<vmem>>, vector<1x128xf32>
    %34 = vector.broadcast %33 : vector<1x128xf32> to vector<8x128xf32>
    %35 = arith.addf %32, %34 : vector<8x128xf32>
    %c0_20 = arith.constant 0 : index
    %c0_21 = arith.constant 0 : index
    %36 = vector.load %arg8[%c0_20, %c0_21] : memref<8x128xf32, #tpu.memory_space<vmem>>, vector<8x128xf32>
    tpu.vector_store %arg8[%c0_20, %c0_21], %35 {strides = array<i32>} : memref<8x128xf32, #tpu.memory_space<vmem>>, vector<8x128xf32>,
    return
  }
  func.func @transform_0(%arg0: i32) -> (i32, i32) {
    %c0_i32 = arith.constant 0 : i32
    %c0_i32_0 = arith.constant 0 : i32
    return %arg0, %c0_i32 : i32, i32
  }
  func.func @transform_1(%arg0: i32) -> (i32, i32) {
    %c0_i32 = arith.constant 0 : i32
    %c0_i32_0 = arith.constant 0 : i32
    %c0_i32_1 = arith.constant 0 : i32
    return %c0_i32, %c0_i32_0 : i32, i32
  }
  func.func @transform_2(%arg0: i32) -> (i32, i32) {
    %c0_i32 = arith.constant 0 : i32
    %c0_i32_0 = arith.constant 0 : i32
    %c0_i32_1 = arith.constant 0 : i32
    return %c0_i32, %c0_i32_0 : i32, i32
  }
  func.func @transform_3(%arg0: i32) -> (i32, i32) {
    %c0_i32 = arith.constant 0 : i32
    %c0_i32_0 = arith.constant 0 : i32
    %c0_i32_1 = arith.constant 0 : i32
    return %c0_i32, %c0_i32_0 : i32, i32
  }
  func.func @transform_4(%arg0: i32) -> (i32, i32) {
    %c0_i32 = arith.constant 0 : i32
    %c0_i32_0 = arith.constant 0 : i32
    %c0_i32_1 = arith.constant 0 : i32
    return %c0_i32, %c0_i32_0 : i32, i32
  }
  func.func @transform_5(%arg0: i32) -> (i32, i32) {
    %c0_i32 = arith.constant 0 : i32
    %c0_i32_0 = arith.constant 0 : i32
    %c0_i32_1 = arith.constant 0 : i32
    return %c0_i32, %c0_i32_0 : i32, i32
  }
  func.func @transform_6(%arg0: i32) -> (i32, i32) {
    %c0_i32 = arith.constant 0 : i32
    %c0_i32_0 = arith.constant 0 : i32
    %c0_i32_1 = arith.constant 0 : i32
    return %c0_i32, %c0_i32_0 : i32, i32
  }
  func.func @transform_7(%arg0: i32) -> (i32, i32) {
    %c0_i32 = arith.constant 0 : i32
    %c0_i32_0 = arith.constant 0 : i32
    return %arg0, %c0_i32 : i32, i32
  }
}

</mosaic_0001>

<llo_original>
// kernel: model_with_layernorm.1
$region0: #{model_with_layernorm.1}
  #allocation0 [shape = 'u32[]', space=smem, size = 0x4, offset = 0x4, fixed_abs, tag = 'smem constant byte address 0x4 - core index']
  #allocation1 [shape = 'u32[144,128]{1,0:T(1,128)}', space=vmem, size = 0x12000, scoped, tag = 'internal scratch']
  %s0 = inlined_call_operand.vmem [shape: bf16[8,784], index: 0, kind: input, shape index: {}]
  %s1 = inlined_call_operand.vmem [shape: bf16[784,128], index: 1, kind: input, shape index: {}]
  %s2 = inlined_call_operand.vmem [shape: f32[1,128], index: 2, kind: input, shape index: {}]
  %s3 = inlined_call_operand.vmem [shape: f32[1,128], index: 3, kind: input, shape index: {}]
  %s4 = inlined_call_operand.vmem [shape: f32[1,128], index: 4, kind: input, shape index: {}]
  %s5 = inlined_call_operand.vmem [shape: bf16[128,128], index: 5, kind: input, shape index: {}]
  %s6 = inlined_call_operand.vmem [shape: f32[1,128], index: 6, kind: input, shape index: {}]
  %s7 = inlined_call_operand.hbm [shape: f32[8,128], index: 7, kind: output, shape index: {}]
  %s8 = sld [smem:[#allocation0]]
  $region38: #{model_with_layernorm.1} parent=0
    _
  %s10 = ssub.s32 1, %s8
  %s11 = scalar_select 0, %s10, %s8
  $region1: #{model_with_layernorm.1} parent=0
    #allocation2 [shape = 'u8[4096]{0}', space=vmem, size = 0x1000, scoped, tag = 'output window, operand 0, single buffered']
    #allocation3 [shape = 's32[1]{0}', space=sflag, size = 0x4, scoped, tag = 'scoped memory for model_with_layernorm.1']
    %12 = vsyncpa [#allocation3], 0
    // Predicated region
    $region2: #{model_with_layernorm.1} parent=1 // pred_check
      _
    $region3: #{model_with_layernorm.1} parent=1 // pred_check_branch
      %14 = sbr.rel (0) target = $region5
    $region4: #{model_with_layernorm.1} parent=1 // pred_region
      _
    $region5: #{model_with_layernorm.1} parent=1 // pred_fallthru
      _
    // Predicated region
    $region6: #{model_with_layernorm.1} parent=1 // pred_check
      _
    $region7: #{model_with_layernorm.1} parent=1 // pred_check_branch
      %16 = sbr.rel (0) target = $region9
    $region8: #{model_with_layernorm.1} parent=1 // pred_region
      _
    $region9: #{model_with_layernorm.1} parent=1 // pred_fallthru
      _
    // Predicated region
    $region10: #{model_with_layernorm.1} parent=1 // pred_check
      _
    $region11: #{model_with_layernorm.1} parent=1 // pred_check_branch
      %18 = sbr.rel (0) target = $region13
    $region12: #{model_with_layernorm.1} parent=1 // pred_region
      _
    $region13: #{model_with_layernorm.1} parent=1 // pred_fallthru
      _
    // Predicated region
    $region14: #{model_with_layernorm.1} parent=1 // pred_check
      _
    $region15: #{model_with_layernorm.1} parent=1 // pred_check_branch
      %20 = sbr.rel (0) target = $region17
    $region16: #{model_with_layernorm.1} parent=1 // pred_region
      _
    $region17: #{model_with_layernorm.1} parent=1 // pred_fallthru
      _
    // Predicated region
    $region18: #{model_with_layernorm.1} parent=1 // pred_check
      _
    $region19: #{model_with_layernorm.1} parent=1 // pred_check_branch
      %22 = sbr.rel (0) target = $region21
    $region20: #{model_with_layernorm.1} parent=1 // pred_region
      _
    $region21: #{model_with_layernorm.1} parent=1 // pred_fallthru
      _
    // Predicated region
    $region22: #{model_with_layernorm.1} parent=1 // pred_check
      _
    $region23: #{model_with_layernorm.1} parent=1 // pred_check_branch
      %24 = sbr.rel (0) target = $region25
    $region24: #{model_with_layernorm.1} parent=1 // pred_region
      _
    $region25: #{model_with_layernorm.1} parent=1 // pred_fallthru
      _
    // Predicated region
    $region26: #{model_with_layernorm.1} parent=1 // pred_check
      _
    $region27: #{model_with_layernorm.1} parent=1 // pred_check_branch
      %26 = sbr.rel (0) target = $region29
    $region28: #{model_with_layernorm.1} parent=1 // pred_region
      _
    $region29: #{model_with_layernorm.1} parent=1 // pred_fallthru
      _
    %v28 = vld [vmem:[%s0] sm:$0xff]
    %v29 = vld [vmem:[%s0 + $0x8] sm:$0xff]
    %v30 = vld [vmem:[%s0 + $0x10] sm:$0xff]
    %v31 = vld [vmem:[%s0 + $0x18] sm:$0xf]
    %v32 = vld [vmem:[%s1] sm:$0xf]
    %v33 = vld [vmem:[%s1 + $0x4] sm:$0xf]
    %v34 = vld [vmem:[%s1 + $0x8] sm:$0xf]
    %v35 = vld [vmem:[%s1 + $0xc] sm:$0xf]
    %v36 = vld [vmem:[%s1 + $0x10] sm:$0xf]
    %v37 = vld [vmem:[%s1 + $0x14] sm:$0xf]
    %v38 = vld [vmem:[%s1 + $0x18] sm:$0xf]
    %v39 = vld [vmem:[%s1 + $0x1c] sm:$0xf]
    %v40 = vld [vmem:[%s1 + $0x20] sm:$0xf]
    %v41 = vld [vmem:[%s1 + $0x24] sm:$0xf]
    %v42 = vld [vmem:[%s1 + $0x28] sm:$0xf]
    %v43 = vld [vmem:[%s1 + $0x2c] sm:$0xf]
    %v44 = vld [vmem:[%s1 + $0x30] sm:$0xf]
    %v45 = vld [vmem:[%s1 + $0x34] sm:$0xf]
    %v46 = vld [vmem:[%s1 + $0x38] sm:$0xf]
    %v47 = vld [vmem:[%s1 + $0x3c] sm:$0xf]
    %v48 = vld [vmem:[%s1 + $0x40] sm:$0xf]
    %v49 = vld [vmem:[%s1 + $0x44] sm:$0xf]
    %v50 = vld [vmem:[%s1 + $0x48] sm:$0xf]
    %v51 = vld [vmem:[%s1 + $0x4c] sm:$0xf]
    %v52 = vld [vmem:[%s1 + $0x50] sm:$0xf]
    %v53 = vld [vmem:[%s1 + $0x54] sm:$0xf]
    %v54 = vld [vmem:[%s1 + $0x58] sm:$0xf]
    %v55 = vld [vmem:[%s1 + $0x5c] sm:$0xf]
    %v56 = vld [vmem:[%s1 + $0x60] sm:$0xf]
    %v57 = vld [vmem:[%s1 + $0x64] sm:$0xf]
    %v58 = vld [vmem:[%s1 + $0x68] sm:$0xf]
    %v59 = vld [vmem:[%s1 + $0x6c] sm:$0xf]
    %v60 = vld [vmem:[%s1 + $0x70] sm:$0xf]
    %v61 = vld [vmem:[%s1 + $0x74] sm:$0xf]
    %v62 = vld [vmem:[%s1 + $0x78] sm:$0xf]
    %v63 = vld [vmem:[%s1 + $0x7c] sm:$0xf]
    %v64 = vld [vmem:[%s1 + $0x80] sm:$0xf]
    %v65 = vld [vmem:[%s1 + $0x84] sm:$0xf]
    %v66 = vld [vmem:[%s1 + $0x88] sm:$0xf]
    %v67 = vld [vmem:[%s1 + $0x8c] sm:$0xf]
    %v68 = vld [vmem:[%s1 + $0x90] sm:$0xf]
    %v69 = vld [vmem:[%s1 + $0x94] sm:$0xf]
    %v70 = vld [vmem:[%s1 + $0x98] sm:$0xf]
    %v71 = vld [vmem:[%s1 + $0x9c] sm:$0xf]
    %v72 = vld [vmem:[%s1 + $0xa0] sm:$0xf]
    %v73 = vld [vmem:[%s1 + $0xa4] sm:$0xf]
    %v74 = vld [vmem:[%s1 + $0xa8] sm:$0xf]
    %v75 = vld [vmem:[%s1 + $0xac] sm:$0xf]
    %v76 = vld [vmem:[%s1 + $0xb0] sm:$0xf]
    %v77 = vld [vmem:[%s1 + $0xb4] sm:$0xf]
    %v78 = vld [vmem:[%s1 + $0xb8] sm:$0xf]
    %v79 = vld [vmem:[%s1 + $0xbc] sm:$0xf]
    %v80 = vld [vmem:[%s1 + $0xc0] sm:$0xf]
    %v81 = vld [vmem:[%s1 + $0xc4] sm:$0xf]
    %v82 = vld [vmem:[%s1 + $0xc8] sm:$0xf]
    %v83 = vld [vmem:[%s1 + $0xcc] sm:$0xf]
    %v84 = vld [vmem:[%s1 + $0xd0] sm:$0xf]
    %v85 = vld [vmem:[%s1 + $0xd4] sm:$0xf]
    %v86 = vld [vmem:[%s1 + $0xd8] sm:$0xf]
    %v87 = vld [vmem:[%s1 + $0xdc] sm:$0xf]
    %v88 = vld [vmem:[%s1 + $0xe0] sm:$0xf]
    %v89 = vld [vmem:[%s1 + $0xe4] sm:$0xf]
    %v90 = vld [vmem:[%s1 + $0xe8] sm:$0xf]
    %v91 = vld [vmem:[%s1 + $0xec] sm:$0xf]
    %v92 = vld [vmem:[%s1 + $0xf0] sm:$0xf]
    %v93 = vld [vmem:[%s1 + $0xf4] sm:$0xf]
    %v94 = vld [vmem:[%s1 + $0xf8] sm:$0xf]
    %v95 = vld [vmem:[%s1 + $0xfc] sm:$0xf]
    %v96 = vld [vmem:[%s1 + $0x100] sm:$0xf]
    %v97 = vld [vmem:[%s1 + $0x104] sm:$0xf]
    %v98 = vld [vmem:[%s1 + $0x108] sm:$0xf]
    %v99 = vld [vmem:[%s1 + $0x10c] sm:$0xf]
    %v100 = vld [vmem:[%s1 + $0x110] sm:$0xf]
    %v101 = vld [vmem:[%s1 + $0x114] sm:$0xf]
    %v102 = vld [vmem:[%s1 + $0x118] sm:$0xf]
    %v103 = vld [vmem:[%s1 + $0x11c] sm:$0xf]
    %v104 = vld [vmem:[%s1 + $0x120] sm:$0xf]
    %v105 = vld [vmem:[%s1 + $0x124] sm:$0xf]
    %v106 = vld [vmem:[%s1 + $0x128] sm:$0xf]
    %v107 = vld [vmem:[%s1 + $0x12c] sm:$0xf]
    %v108 = vld [vmem:[%s1 + $0x130] sm:$0xf]
    %v109 = vld [vmem:[%s1 + $0x134] sm:$0xf]
    %v110 = vld [vmem:[%s1 + $0x138] sm:$0xf]
    %v111 = vld [vmem:[%s1 + $0x13c] sm:$0xf]
    %v112 = vld [vmem:[%s1 + $0x140] sm:$0xf]
    %v113 = vld [vmem:[%s1 + $0x144] sm:$0xf]
    %v114 = vld [vmem:[%s1 + $0x148] sm:$0xf]
    %v115 = vld [vmem:[%s1 + $0x14c] sm:$0xf]
    %v116 = vld [vmem:[%s1 + $0x150] sm:$0xf]
    %v117 = vld [vmem:[%s1 + $0x154] sm:$0xf]
    %v118 = vld [vmem:[%s1 + $0x158] sm:$0xf]
    %v119 = vld [vmem:[%s1 + $0x15c] sm:$0xf]
    %v120 = vld [vmem:[%s1 + $0x160] sm:$0xf]
    %v121 = vld [vmem:[%s1 + $0x164] sm:$0xf]
    %v122 = vld [vmem:[%s1 + $0x168] sm:$0xf]
    %v123 = vld [vmem:[%s1 + $0x16c] sm:$0xf]
    %v124 = vld [vmem:[%s1 + $0x170] sm:$0xf]
    %v125 = vld [vmem:[%s1 + $0x174] sm:$0xf]
    %v126 = vld [vmem:[%s1 + $0x178] sm:$0xf]
    %v127 = vld [vmem:[%s1 + $0x17c] sm:$0xf]
    %v128 = vld [vmem:[%s1 + $0x180] sm:$0xf]
    %v129 = vld [vmem:[%s1 + $0x184] sm:$0xf]
    %v130 = vld [vmem:[%s2] sm:$0x1]
    %v132 = vlaneseq
    %v133 = vshrl.u32 %v132, 7
    %v134 = vsub.s32 0, %v133
    %v135 = vrot.slane %v130, %v134
    %v141 = vunpack.c.l.b16 %v28
    %v142 = vunpack.c.h.b16 %v28
    %v143 = vunpack.c.l.b16 %v29
    %v144 = vunpack.c.h.b16 %v29
    %v145 = vunpack.c.l.b16 %v30
    %v146 = vunpack.c.h.b16 %v30
    %v147 = vunpack.c.l.b16 %v31
    %v148 = vpack.c.b16 %v141, %v141
    %v149 = vpack.c.b16 %v142, %v142
    %v150 = vpack.c.b16 %v143, %v143
    %v151 = vpack.c.b16 %v144, %v144
    %v152 = vpack.c.b16 %v145, %v145
    %v153 = vpack.c.b16 %v146, %v146
    %v154 = vpack.c.b16 %v147, %v147
    %v259 = vunpack.c.l.b16 %v32
    %v260 = vunpack.c.l.b16 %v33
    %v261 = vunpack.c.l.b16 %v34
    %v262 = vunpack.c.l.b16 %v35
    %v263 = vunpack.c.l.b16 %v36
    %v264 = vunpack.c.l.b16 %v37
    %v265 = vunpack.c.l.b16 %v38
    %v266 = vunpack.c.l.b16 %v39
    %v267 = vunpack.c.l.b16 %v40
    %v268 = vunpack.c.l.b16 %v41
    %v269 = vunpack.c.l.b16 %v42
    %v270 = vunpack.c.l.b16 %v43
    %v271 = vunpack.c.l.b16 %v44
    %v272 = vunpack.c.l.b16 %v45
    %v273 = vunpack.c.l.b16 %v46
    %v274 = vunpack.c.l.b16 %v47
    %v275 = vunpack.c.l.b16 %v48
    %v276 = vunpack.c.l.b16 %v49
    %v277 = vunpack.c.l.b16 %v50
    %v278 = vunpack.c.l.b16 %v51
    %v279 = vunpack.c.l.b16 %v52
    %v280 = vunpack.c.l.b16 %v53
    %v281 = vunpack.c.l.b16 %v54
    %v282 = vunpack.c.l.b16 %v55
    %v283 = vunpack.c.l.b16 %v56
    %v284 = vunpack.c.l.b16 %v57
    %v285 = vunpack.c.l.b16 %v58
    %v286 = vunpack.c.l.b16 %v59
    %v287 = vunpack.c.l.b16 %v60
    %v288 = vunpack.c.l.b16 %v61
    %v289 = vunpack.c.l.b16 %v62
    %v290 = vunpack.c.l.b16 %v63
    %v291 = vunpack.c.l.b16 %v64
    %v292 = vunpack.c.l.b16 %v65
    %v293 = vunpack.c.l.b16 %v66
    %v294 = vunpack.c.l.b16 %v67
    %v295 = vunpack.c.l.b16 %v68
    %v296 = vunpack.c.l.b16 %v69
    %v297 = vunpack.c.l.b16 %v70
    %v298 = vunpack.c.l.b16 %v71
    %v299 = vunpack.c.l.b16 %v72
    %v300 = vunpack.c.l.b16 %v73
    %v301 = vunpack.c.l.b16 %v74
    %v302 = vunpack.c.l.b16 %v75
    %v303 = vunpack.c.l.b16 %v76
    %v304 = vunpack.c.l.b16 %v77
    %v305 = vunpack.c.l.b16 %v78
    %v306 = vunpack.c.l.b16 %v79
    %v307 = vunpack.c.l.b16 %v80
    %v308 = vunpack.c.l.b16 %v81
    %v309 = vunpack.c.l.b16 %v82
    %v310 = vunpack.c.l.b16 %v83
    %v311 = vunpack.c.l.b16 %v84
    %v312 = vunpack.c.l.b16 %v85
    %v313 = vunpack.c.l.b16 %v86
    %v314 = vunpack.c.l.b16 %v87
    %v315 = vunpack.c.l.b16 %v88
    %v316 = vunpack.c.l.b16 %v89
    %v317 = vunpack.c.l.b16 %v90
    %v318 = vunpack.c.l.b16 %v91
    %v319 = vunpack.c.l.b16 %v92
    %v320 = vunpack.c.l.b16 %v93
    %v321 = vunpack.c.l.b16 %v94
    %v322 = vunpack.c.l.b16 %v95
    %v323 = vunpack.c.l.b16 %v96
    %v324 = vunpack.c.l.b16 %v97
    %v325 = vunpack.c.l.b16 %v98
    %v326 = vunpack.c.l.b16 %v99
    %v327 = vunpack.c.l.b16 %v100
    %v328 = vunpack.c.l.b16 %v101
    %v329 = vunpack.c.l.b16 %v102
    %v330 = vunpack.c.l.b16 %v103
    %v331 = vunpack.c.l.b16 %v104
    %v332 = vunpack.c.l.b16 %v105
    %v333 = vunpack.c.l.b16 %v106
    %v334 = vunpack.c.l.b16 %v107
    %v335 = vunpack.c.l.b16 %v108
    %v336 = vunpack.c.l.b16 %v109
    %v337 = vunpack.c.l.b16 %v110
    %v338 = vunpack.c.l.b16 %v111
    %v339 = vunpack.c.l.b16 %v112
    %v340 = vunpack.c.l.b16 %v113
    %v341 = vunpack.c.l.b16 %v114
    %v342 = vunpack.c.l.b16 %v115
    %v343 = vunpack.c.l.b16 %v116
    %v344 = vunpack.c.l.b16 %v117
    %v345 = vunpack.c.l.b16 %v118
    %v346 = vunpack.c.l.b16 %v119
    %v347 = vunpack.c.l.b16 %v120
    %v348 = vunpack.c.l.b16 %v121
    %v349 = vunpack.c.l.b16 %v122
    %v350 = vunpack.c.l.b16 %v123
    %v351 = vunpack.c.l.b16 %v124
    %v352 = vunpack.c.l.b16 %v125
    %v353 = vunpack.c.l.b16 %v126
    %v354 = vunpack.c.l.b16 %v127
    %v355 = vunpack.c.l.b16 %v128
    %v356 = vunpack.c.l.b16 %v129
    %v357 = vpack.c.b16 %v260, %v259
    %v358 = vpack.c.b16 %v262, %v261
    %v359 = vpack.c.b16 %v264, %v263
    %v360 = vpack.c.b16 %v266, %v265
    %v361 = vpack.c.b16 %v268, %v267
    %v362 = vpack.c.b16 %v270, %v269
    %v363 = vpack.c.b16 %v272, %v271
    %v364 = vpack.c.b16 %v274, %v273
    %v365 = vpack.c.b16 %v276, %v275
    %v366 = vpack.c.b16 %v278, %v277
    %v367 = vpack.c.b16 %v280, %v279
    %v368 = vpack.c.b16 %v282, %v281
    %v369 = vpack.c.b16 %v284, %v283
    %v370 = vpack.c.b16 %v286, %v285
    %v371 = vpack.c.b16 %v288, %v287
    %v372 = vpack.c.b16 %v290, %v289
    %v373 = vpack.c.b16 %v292, %v291
    %v374 = vpack.c.b16 %v294, %v293
    %v375 = vpack.c.b16 %v296, %v295
    %v376 = vpack.c.b16 %v298, %v297
    %v377 = vpack.c.b16 %v300, %v299
    %v378 = vpack.c.b16 %v302, %v301
    %v379 = vpack.c.b16 %v304, %v303
    %v380 = vpack.c.b16 %v306, %v305
    %v381 = vpack.c.b16 %v308, %v307
    %v382 = vpack.c.b16 %v310, %v309
    %v383 = vpack.c.b16 %v312, %v311
    %v384 = vpack.c.b16 %v314, %v313
    %v385 = vpack.c.b16 %v316, %v315
    %v386 = vpack.c.b16 %v318, %v317
    %v387 = vpack.c.b16 %v320, %v319
    %v388 = vpack.c.b16 %v322, %v321
    %v389 = vpack.c.b16 %v324, %v323
    %v390 = vpack.c.b16 %v326, %v325
    %v391 = vpack.c.b16 %v328, %v327
    %v392 = vpack.c.b16 %v330, %v329
    %v393 = vpack.c.b16 %v332, %v331
    %v394 = vpack.c.b16 %v334, %v333
    %v395 = vpack.c.b16 %v336, %v335
    %v396 = vpack.c.b16 %v338, %v337
    %v397 = vpack.c.b16 %v340, %v339
    %v398 = vpack.c.b16 %v342, %v341
    %v399 = vpack.c.b16 %v344, %v343
    %v400 = vpack.c.b16 %v346, %v345
    %v401 = vpack.c.b16 %v348, %v347
    %v402 = vpack.c.b16 %v350, %v349
    %v403 = vpack.c.b16 %v352, %v351
    %v404 = vpack.c.b16 %v354, %v353
    %v405 = vpack.c.b16 %v356, %v355
    %vm455 = vcmask 130048
    %v457 = vsel %vm455, %v154, 0
    %459 = vmatprep.subr.bf16.mxu0 0
    %460 = vmatpush1.bf16.msra.mxu0 %v364
    %461 = vmatprep.subr.bf16.mxu0 0
    %462 = vmatpush1.bf16.msra.mxu0 %v363
    %463 = vmatprep.subr.bf16.mxu0 0
    %464 = vmatpush1.bf16.msra.mxu0 %v362
    %465 = vmatprep.subr.bf16.mxu0 0
    %466 = vmatpush1.bf16.msra.mxu0 %v361
    %467 = vmatprep.subr.bf16.mxu0 0
    %468 = vmatpush1.bf16.msra.mxu0 %v360
    %469 = vmatprep.subr.bf16.mxu0 0
    %470 = vmatpush1.bf16.msra.mxu0 %v359
    %471 = vmatprep.subr.bf16.mxu0 0
    %472 = vmatpush1.bf16.msra.mxu0 %v358
    %473 = vmatprep.subr.bf16.mxu0 0
    %474 = vmatpush1.bf16.msra.mxu0 %v357
    %475 = vmatprep.subr.bf16.mxu0 0
    %476 = vmatpush2.bf16.msra.mxu0 %v372
    %477 = vmatprep.subr.bf16.mxu0 0
    %478 = vmatpush2.bf16.msra.mxu0 %v371
    %479 = vmatprep.subr.bf16.mxu0 0
    %480 = vmatpush2.bf16.msra.mxu0 %v370
    %481 = vmatprep.subr.bf16.mxu0 0
    %482 = vmatpush2.bf16.msra.mxu0 %v369
    %483 = vmatprep.subr.bf16.mxu0 0
    %484 = vmatpush2.bf16.msra.mxu0 %v368
    %485 = vmatprep.subr.bf16.mxu0 0
    %486 = vmatpush2.bf16.msra.mxu0 %v367
    %487 = vmatprep.subr.bf16.mxu0 0
    %488 = vmatpush2.bf16.msra.mxu0 %v366
    %489 = vmatprep.subr.bf16.mxu0 0
    %490 = vmatpush2.bf16.msra.mxu0 %v365
    %491 = vmatprep.mubr.bf16.mxu0 %v149
    %492 = vmatmul.mubr.bf16.gmra.mxu0 %v148
    %v493 = vpop.f32.mrf.mxu0
    %v494 = vadd.f32 %v135, %v493
    %v495 = vpop.f32.mrf.mxu0
    %v496 = vpop.f32.mrf.mxu0
    %v497 = vpop.f32.mrf.mxu0
    %498 = vdwg.mxu0
    %499 = vmatprep.subr.bf16.mxu0 0
    %500 = vmatpush1.bf16.msra.mxu0 %v380
    %501 = vmatprep.subr.bf16.mxu0 0
    %502 = vmatpush1.bf16.msra.mxu0 %v379
    %503 = vmatprep.subr.bf16.mxu0 0
    %504 = vmatpush1.bf16.msra.mxu0 %v378
    %505 = vmatprep.subr.bf16.mxu0 0
    %506 = vmatpush1.bf16.msra.mxu0 %v377
    %507 = vmatprep.subr.bf16.mxu0 0
    %508 = vmatpush1.bf16.msra.mxu0 %v376
    %509 = vmatprep.subr.bf16.mxu0 0
    %510 = vmatpush1.bf16.msra.mxu0 %v375
    %511 = vmatprep.subr.bf16.mxu0 0
    %512 = vmatpush1.bf16.msra.mxu0 %v374
    %513 = vmatprep.subr.bf16.mxu0 0
    %514 = vmatpush1.bf16.msra.mxu0 %v373
    %515 = vmatprep.subr.bf16.mxu0 0
    %516 = vmatpush2.bf16.msra.mxu0 %v388
    %517 = vmatprep.subr.bf16.mxu0 0
    %518 = vmatpush2.bf16.msra.mxu0 %v387
    %519 = vmatprep.subr.bf16.mxu0 0
    %520 = vmatpush2.bf16.msra.mxu0 %v386
    %521 = vmatprep.subr.bf16.mxu0 0
    %522 = vmatpush2.bf16.msra.mxu0 %v385
    %523 = vmatprep.subr.bf16.mxu0 0
    %524 = vmatpush2.bf16.msra.mxu0 %v384
    %525 = vmatprep.subr.bf16.mxu0 0
    %526 = vmatpush2.bf16.msra.mxu0 %v383
    %527 = vmatprep.subr.bf16.mxu0 0
    %528 = vmatpush2.bf16.msra.mxu0 %v382
    %529 = vmatprep.subr.bf16.mxu0 0
    %530 = vmatpush2.bf16.msra.mxu0 %v381
    %531 = vmatprep.mubr.bf16.mxu0 %v151
    %532 = vmatmul.mubr.bf16.gmra.mxu0 %v150
    %v533 = vpop.f32.mrf.mxu0
    %v534 = vadd.f32 %v494, %v533
    %v535 = vpop.f32.mrf.mxu0
    %v536 = vpop.f32.mrf.mxu0
    %v537 = vpop.f32.mrf.mxu0
    %538 = vdwg.mxu0
    %539 = vmatprep.subr.bf16.mxu0 0
    %540 = vmatpush1.bf16.msra.mxu0 %v396
    %541 = vmatprep.subr.bf16.mxu0 0
    %542 = vmatpush1.bf16.msra.mxu0 %v395
    %543 = vmatprep.subr.bf16.mxu0 0
    %544 = vmatpush1.bf16.msra.mxu0 %v394
    %545 = vmatprep.subr.bf16.mxu0 0
    %546 = vmatpush1.bf16.msra.mxu0 %v393
    %547 = vmatprep.subr.bf16.mxu0 0
    %548 = vmatpush1.bf16.msra.mxu0 %v392
    %549 = vmatprep.subr.bf16.mxu0 0
    %550 = vmatpush1.bf16.msra.mxu0 %v391
    %551 = vmatprep.subr.bf16.mxu0 0
    %552 = vmatpush1.bf16.msra.mxu0 %v390
    %553 = vmatprep.subr.bf16.mxu0 0
    %554 = vmatpush1.bf16.msra.mxu0 %v389
    %555 = vmatprep.subr.bf16.mxu0 0
    %556 = vmatpush2.bf16.msra.mxu0 %v404
    %557 = vmatprep.subr.bf16.mxu0 0
    %558 = vmatpush2.bf16.msra.mxu0 %v403
    %559 = vmatprep.subr.bf16.mxu0 0
    %560 = vmatpush2.bf16.msra.mxu0 %v402
    %561 = vmatprep.subr.bf16.mxu0 0
    %562 = vmatpush2.bf16.msra.mxu0 %v401
    %563 = vmatprep.subr.bf16.mxu0 0
    %564 = vmatpush2.bf16.msra.mxu0 %v400
    %565 = vmatprep.subr.bf16.mxu0 0
    %566 = vmatpush2.bf16.msra.mxu0 %v399
    %567 = vmatprep.subr.bf16.mxu0 0
    %568 = vmatpush2.bf16.msra.mxu0 %v398
    %569 = vmatprep.subr.bf16.mxu0 0
    %570 = vmatpush2.bf16.msra.mxu0 %v397
    %571 = vmatprep.mubr.bf16.mxu0 %v153
    %572 = vmatmul.mubr.bf16.gmra.mxu0 %v152
    %v573 = vpop.f32.mrf.mxu0
    %v574 = vadd.f32 %v534, %v573
    %v575 = vpop.f32.mrf.mxu0
    %v576 = vpop.f32.mrf.mxu0
    %v577 = vpop.f32.mrf.mxu0
    %578 = vdwg.mxu0
    %579 = vmatprep.subr.bf16.mxu0 0
    %580 = vmatpush1.bf16.msra.mxu0 0
    %581 = vmatprep.subr.bf16.mxu0 0
    %582 = vmatpush1.bf16.msra.mxu0 0
    %583 = vmatprep.subr.bf16.mxu0 0
    %584 = vmatpush1.bf16.msra.mxu0 0
    %585 = vmatprep.subr.bf16.mxu0 0
    %586 = vmatpush1.bf16.msra.mxu0 0
    %587 = vmatprep.subr.bf16.mxu0 0
    %588 = vmatpush1.bf16.msra.mxu0 0
    %589 = vmatprep.subr.bf16.mxu0 0
    %590 = vmatpush1.bf16.msra.mxu0 0
    %591 = vmatprep.subr.bf16.mxu0 0
    %592 = vmatpush1.bf16.msra.mxu0 0
    %593 = vmatprep.subr.bf16.mxu0 0
    %594 = vmatpush1.bf16.msra.mxu0 %v405
    %595 = vmatprep.subr.bf16.mxu0 0
    %596 = vmatpush2.bf16.msra.mxu0 0
    %597 = vmatprep.subr.bf16.mxu0 0
    %598 = vmatpush2.bf16.msra.mxu0 0
    %599 = vmatprep.subr.bf16.mxu0 0
    %600 = vmatpush2.bf16.msra.mxu0 0
    %601 = vmatprep.subr.bf16.mxu0 0
    %602 = vmatpush2.bf16.msra.mxu0 0
    %603 = vmatprep.subr.bf16.mxu0 0
    %604 = vmatpush2.bf16.msra.mxu0 0
    %605 = vmatprep.subr.bf16.mxu0 0
    %606 = vmatpush2.bf16.msra.mxu0 0
    %607 = vmatprep.subr.bf16.mxu0 0
    %608 = vmatpush2.bf16.msra.mxu0 0
    %609 = vmatprep.subr.bf16.mxu0 0
    %610 = vmatpush2.bf16.msra.mxu0 0
    %611 = vmatprep.mubr.bf16.mxu0 0
    %612 = vmatmul.mubr.bf16.gmra.mxu0 %v457
    %v613 = vpop.f32.mrf.mxu0
    %v614 = vadd.f32 %v574, %v613
    %v615 = vpop.f32.mrf.mxu0
    %v616 = vpop.f32.mrf.mxu0
    %v617 = vpop.f32.mrf.mxu0
    %618 = vdwg.mxu0
    %619 = vadd.xlane.f32.xlu0 %v614
    %v620 = vpop.xlane.xlu0 %619
    %v621 = vrcp.pop 128.0
    %v622 = vmul.f32 %v620, %v621
    %v623 = vsub.f32 %v614, %v622
    %v624 = vmul.f32 %v623, %v623
    %625 = vadd.xlane.f32.xlu0 %v624
    %v626 = vpop.xlane.xlu0 %625
    %v627 = vmul.f32 %v626, %v621
    %v628 = vadd.f32 %v627, 1e-05
    %v629 = vrsqrt.pop %v628
    %v630 = vmul.f32 %v623, %v629
    %v631 = vld [vmem:[%s3] sm:$0x1]
    %v633 = vlaneseq
    %v634 = vshrl.u32 %v633, 7
    %v635 = vsub.s32 0, %v634
    %v636 = vrot.slane %v631, %v635
    %v638 = vmul.f32 %v630, %v636
    %v639 = vld [vmem:[%s4] sm:$0x1]
    %v641 = vlaneseq
    %v642 = vshrl.u32 %v641, 7
    %v643 = vsub.s32 0, %v642
    %v644 = vrot.slane %v639, %v643
    %v646 = vadd.f32 %v638, %v644
    %v647 = vmax.f32 %v646, 0.0
    %v648 = vpack.c.bf16 %v647, %v647
    %v649 = vld [vmem:[%s5] sm:$0xf]
    %v650 = vld [vmem:[%s5 + $0x4] sm:$0xf]
    %v651 = vld [vmem:[%s5 + $0x8] sm:$0xf]
    %v652 = vld [vmem:[%s5 + $0xc] sm:$0xf]
    %v653 = vld [vmem:[%s5 + $0x10] sm:$0xf]
    %v654 = vld [vmem:[%s5 + $0x14] sm:$0xf]
    %v655 = vld [vmem:[%s5 + $0x18] sm:$0xf]
    %v656 = vld [vmem:[%s5 + $0x1c] sm:$0xf]
    %v657 = vld [vmem:[%s5 + $0x20] sm:$0xf]
    %v658 = vld [vmem:[%s5 + $0x24] sm:$0xf]
    %v659 = vld [vmem:[%s5 + $0x28] sm:$0xf]
    %v660 = vld [vmem:[%s5 + $0x2c] sm:$0xf]
    %v661 = vld [vmem:[%s5 + $0x30] sm:$0xf]
    %v662 = vld [vmem:[%s5 + $0x34] sm:$0xf]
    %v663 = vld [vmem:[%s5 + $0x38] sm:$0xf]
    %v664 = vld [vmem:[%s5 + $0x3c] sm:$0xf]
    %v665 = vld [vmem:[%s6] sm:$0x1]
    %v667 = vlaneseq
    %v668 = vshrl.u32 %v667, 7
    %v669 = vsub.s32 0, %v668
    %v670 = vrot.slane %v665, %v669
    %v688 = vunpack.c.l.b16 %v649
    %v689 = vunpack.c.l.b16 %v650
    %v690 = vunpack.c.l.b16 %v651
    %v691 = vunpack.c.l.b16 %v652
    %v692 = vunpack.c.l.b16 %v653
    %v693 = vunpack.c.l.b16 %v654
    %v694 = vunpack.c.l.b16 %v655
    %v695 = vunpack.c.l.b16 %v656
    %v696 = vunpack.c.l.b16 %v657
    %v697 = vunpack.c.l.b16 %v658
    %v698 = vunpack.c.l.b16 %v659
    %v699 = vunpack.c.l.b16 %v660
    %v700 = vunpack.c.l.b16 %v661
    %v701 = vunpack.c.l.b16 %v662
    %v702 = vunpack.c.l.b16 %v663
    %v703 = vunpack.c.l.b16 %v664
    %v704 = vpack.c.b16 %v689, %v688
    %v705 = vpack.c.b16 %v691, %v690
    %v706 = vpack.c.b16 %v693, %v692
    %v707 = vpack.c.b16 %v695, %v694
    %v708 = vpack.c.b16 %v697, %v696
    %v709 = vpack.c.b16 %v699, %v698
    %v710 = vpack.c.b16 %v701, %v700
    %v711 = vpack.c.b16 %v703, %v702
    %720 = vmatprep.subr.bf16.mxu0 0
    %721 = vmatpush1.bf16.msra.mxu0 %v711
    %722 = vmatprep.subr.bf16.mxu0 0
    %723 = vmatpush1.bf16.msra.mxu0 %v710
    %724 = vmatprep.subr.bf16.mxu0 0
    %725 = vmatpush1.bf16.msra.mxu0 %v709
    %726 = vmatprep.subr.bf16.mxu0 0
    %727 = vmatpush1.bf16.msra.mxu0 %v708
    %728 = vmatprep.subr.bf16.mxu0 0
    %729 = vmatpush1.bf16.msra.mxu0 %v707
    %730 = vmatprep.subr.bf16.mxu0 0
    %731 = vmatpush1.bf16.msra.mxu0 %v706
    %732 = vmatprep.subr.bf16.mxu0 0
    %733 = vmatpush1.bf16.msra.mxu0 %v705
    %734 = vmatprep.subr.bf16.mxu0 0
    %735 = vmatpush1.bf16.msra.mxu0 %v704
    %736 = vmatprep.subr.bf16.mxu0 0
    %737 = vmatpush2.bf16.msra.mxu0 0
    %738 = vmatprep.subr.bf16.mxu0 0
    %739 = vmatpush2.bf16.msra.mxu0 0
    %740 = vmatprep.subr.bf16.mxu0 0
    %741 = vmatpush2.bf16.msra.mxu0 0
    %742 = vmatprep.subr.bf16.mxu0 0
    %743 = vmatpush2.bf16.msra.mxu0 0
    %744 = vmatprep.subr.bf16.mxu0 0
    %745 = vmatpush2.bf16.msra.mxu0 0
    %746 = vmatprep.subr.bf16.mxu0 0
    %747 = vmatpush2.bf16.msra.mxu0 0
    %748 = vmatprep.subr.bf16.mxu0 0
    %749 = vmatpush2.bf16.msra.mxu0 0
    %750 = vmatprep.subr.bf16.mxu0 0
    %751 = vmatpush2.bf16.msra.mxu0 0
    %752 = vmatprep.mubr.bf16.mxu0 0
    %753 = vmatmul.mubr.bf16.gmra.mxu0 %v648
    %v754 = vpop.f32.mrf.mxu0
    %v755 = vadd.f32 %v670, %v754
    %v756 = vpop.f32.mrf.mxu0
    %v757 = vpop.f32.mrf.mxu0
    %v758 = vpop.f32.mrf.mxu0
    %759 = vdwg.mxu0
    %760 = vst [vmem:[#allocation2] sm:$0xff] %v755
    // Predicated region
    $region30: #{model_with_layernorm.1} parent=1 // pred_check
      _
    $region31: #{model_with_layernorm.1} parent=1 // pred_check_branch
      %762 = sbr.rel (0) target = $region33
    $region32: #{model_with_layernorm.1} parent=1 // pred_region
      %s764 = ssub.s32 128, 128
      %765 = vsyncadd [#allocation3], %s764
      %s767 = sshll.u32 [#allocation2], 4
      %s768 = int_to_ptr.vmem [resolvable:$true] %s767
      %770 = dma.vmem_to_hbm [thread:$0]  %s768, 128, %s7, [#allocation3]
    $region33: #{model_with_layernorm.1} parent=1 // pred_fallthru
      _
    // Predicated region
    $region34: #{model_with_layernorm.1} parent=1 // pred_check
      _
    $region35: #{model_with_layernorm.1} parent=1 // pred_check_branch
      %772 = sbr.rel (0) target = $region37
    $region36: #{model_with_layernorm.1} parent=1 // pred_region
      %773 = dma.done [#allocation3], 128
    $region37: #{model_with_layernorm.1} parent=1 // pred_fallthru
      _
    %774 = vsyncpa [#allocation3], 1

</llo_original>
